<compile_context>
chip_gen: v6e
topology: v6e:2x2x1
jax: 0.10.0
libtpu: 0.0.40
codegen_flags: <defaults>
</compile_context>

<pallas_src>
import functools

import jax
import jax.numpy as jnp
from jax.experimental import pallas as pl
from jax.experimental.pallas import tpu as pltpu

HIDDEN = 128   # hidden width (fixed by the PyTorch module)
LANE = 128     # lane width of the weight slab / batch-rounding granularity
N_PAD = 8      # output rows padded to one sublane group (>= n_actions)


def _round_up(x, m):
    return pl.cdiv(x, m) * m


def _mlp_kernel(xt_ref, p_ref, o_ref, *, k, hidden, n_pad):
    """One batch tile, transposed layout: o = relu(W1^T @ x^T + b1) via VPU, then W2^T @ h via MXU.

    Packed-parameter slab layout (rows x 128 lanes, f32):
      rows [0, hidden)                  lanes [0, k)  : W1^T   (hidden, k)
      rows [0, hidden)                  lane  k       : b1     (hidden,) as a column
      rows [hidden, hidden+n_pad)       all lanes     : W2^T zero-padded to (n_pad, hidden)
      rows [hidden+n_pad, hidden+2*n_pad) lane 0      : b2 zero-padded to (n_pad,) as a column
    """
    xt = xt_ref[...]                               # (k, TB) f32, batch on lanes
    wcols = p_ref[0:hidden, :]                     # (hidden, LANE): W1^T columns + b1 column

    # Layer 1 on the VPU: k=4 broadcast-FMA steps (K=4 is far too shallow for the MXU).
    acc = wcols[:, k:k + 1]                        # b1 as (hidden, 1), broadcast over batch lanes
    for j in range(k):
        acc = acc + wcols[:, j:j + 1] * xt[j:j + 1, :]
    h = jnp.maximum(acc, 0.0)                      # (hidden, TB), ReLU in f32 (v5e-safe)

    # Layer 2 on the MXU: bf16 operands, f32 accumulation, lane-dense (n_pad, TB) result.
    w2t = p_ref[hidden:hidden + n_pad, :]          # (n_pad, hidden)
    out = jnp.dot(w2t.astype(jnp.bfloat16), h.astype(jnp.bfloat16),
                  preferred_element_type=jnp.float32)              # (n_pad, TB)
    out = out + p_ref[hidden + n_pad:hidden + 2 * n_pad, 0:1]      # + b2 column (broadcast)
    o_ref[...] = out.astype(o_ref.dtype)


def pack_params(w1, b1, w2, b2):
    """Pack (W1, b1, W2, b2) into one (hidden + 2*N_PAD, LANE) f32 slab -> single DMA."""
    k, hidden = w1.shape
    n_actions = w2.shape[1]
    assert hidden == HIDDEN and n_actions <= N_PAD and k + 1 <= LANE
    rows = hidden + 2 * N_PAD                      # 144, multiple of 8
    slab = jnp.zeros((rows, LANE), jnp.float32)
    slab = slab.at[:hidden, :k].set(w1.T.astype(jnp.float32))
    slab = slab.at[:hidden, k].set(b1.reshape(-1).astype(jnp.float32))
    slab = slab.at[hidden:hidden + n_actions, :].set(w2.T.astype(jnp.float32))
    slab = slab.at[hidden + N_PAD:hidden + N_PAD + n_actions, 0].set(
        b2.reshape(-1).astype(jnp.float32))
    return slab


def net_forward(x, params_slab, n_actions, *, tile_b=1024, single_tile_max=2048):
    """Fused MLP forward: x (batch, k) f32 -> (batch, n_actions) f32."""
    batch, k = x.shape
    rows = params_slab.shape[0]

    # Grid sizing per perf review: one grid step whenever the (128-rounded) batch fits a single
    # tile (<= 2048 rows); otherwise 1024-row tiles on a "parallel" axis for large rollouts.
    padded128 = int(_round_up(batch, LANE))
    tb = padded128 if padded128 <= single_tile_max else int(_round_up(tile_b, LANE))
    padded_b = int(_round_up(batch, tb))
    grid = padded_b // tb

    if padded_b != batch:
        x = jnp.pad(x, ((0, padded_b - batch), (0, 0)))
    # Wrapper transpose is ~8 KiB of traffic (k=4); it buys a lane-major batch layout so the
    # kernel output is a narrow (N_PAD, batch) lane-dense tile instead of (batch, 128).
    xt = x.T                                        # (k, padded_b)

    flops = 2 * padded_b * (k * HIDDEN + HIDDEN * N_PAD)
    bytes_accessed = 4 * (xt.size + params_slab.size + N_PAD * padded_b)

    kernel = functools.partial(_mlp_kernel, k=k, hidden=HIDDEN, n_pad=N_PAD)
    out_t = pl.pallas_call(
        kernel,
        out_shape=jax.ShapeDtypeStruct((N_PAD, padded_b), jnp.float32),
        grid_spec=pltpu.PrefetchScalarGridSpec(
            num_scalar_prefetch=0,
            grid=(grid,),
            in_specs=[
                pl.BlockSpec((k, tb), lambda i: (0, i)),          # x^T, batch-tiled on lanes
                pl.BlockSpec((rows, LANE), lambda i: (0, 0)),     # weight slab, VMEM-resident
            ],
            out_specs=pl.BlockSpec((N_PAD, tb), lambda i: (0, i)),  # lane-dense (8, TB) tile
        ),
        compiler_params=pltpu.CompilerParams(
            # With grid=1 (small batches) megacore sharding is moot; for large batches each
            # 1024-row tile has enough work to justify splitting across v7x TensorCores.
            dimension_semantics=("parallel",),
        ),
        cost_estimate=pl.CostEstimate(
            flops=flops, transcendentals=0, bytes_accessed=bytes_accessed),
    )(xt, params_slab)
    # Tiny slice+transpose (~N_PAD * batch floats).  A fused argmax/sampling epilogue in the
    # kernel would remove even this for the RL action-selection path.
    return out_t[:n_actions, :batch].T


def init_params(key, input_size, n_actions, hidden=HIDDEN):
    """Deterministic init mimicking PyTorch nn.Linear default U(-1/sqrt(fan_in), 1/sqrt(fan_in))."""
    k1, k2, k3, k4 = jax.random.split(key, 4)
    bound1 = 1.0 / jnp.sqrt(input_size)
    bound2 = 1.0 / jnp.sqrt(hidden)
    w1 = jax.random.uniform(k1, (input_size, hidden), jnp.float32, -bound1, bound1)
    b1 = jax.random.uniform(k2, (1, hidden), jnp.float32, -bound1, bound1)
    w2 = jax.random.uniform(k3, (hidden, n_actions), jnp.float32, -bound2, bound2)
    b2 = jax.random.uniform(k4, (1, n_actions), jnp.float32, -bound2, bound2)
    return w1, b1, w2, b2


if __name__ == "__main__":
    # CartPole: observation dim 4, 2 actions.  Batch many rollout states per call so the kernel
    # amortizes launch cost; batch=512 rounds to a single 512-row tile (grid=1).
    input_size, n_actions, batch = 4, 2, 512

    key = jax.random.PRNGKey(0)
    kx, kp = jax.random.split(key)
    x = jax.random.normal(kx, (batch, input_size), jnp.float32)
    w1, b1, w2, b2 = init_params(kp, input_size, n_actions)
    slab = pack_params(w1, b1, w2, b2)

    fwd = jax.jit(net_forward, static_argnums=(2,))

    out = jax.block_until_ready(fwd(x, slab, n_actions))

    # Pure-JAX reference check of forward semantics (bf16 MXU operands -> 2e-2 tolerance).
    ref_h = jnp.maximum(jnp.dot(x, w1, precision=jax.lax.Precision.HIGHEST) + b1, 0.0)
    ref = jnp.dot(ref_h, w2, precision=jax.lax.Precision.HIGHEST) + b2
    assert out.shape == (batch, n_actions)
    assert jnp.allclose(out, ref, atol=2e-2, rtol=2e-2), "mismatch vs reference (batch=512)"

    # Ragged batch exercising the pad / slice path.
    out2 = jax.block_until_ready(fwd(x[:37], slab, n_actions))
    assert out2.shape == (37, n_actions)
    assert jnp.allclose(out2, ref[:37], atol=2e-2, rtol=2e-2), "mismatch vs reference (batch=37)"

    print("KERNEL_OK")
</pallas_src>

<mosaic_0001>
module attributes {stable_mosaic.version = 11 : i64} {
  func.func @_mlp_kernel(%arg0: i32, %arg1: memref<4x512xf32, #tpu.memory_space<vmem>>, %arg2: memref<144x128xf32, #tpu.memory_space<vmem>>, %arg3: memref<8x512xf32, #tpu.memory_space<vmem>>) attributes {dimension_semantics = [#tpu.dimension_semantics<parallel>], iteration_bounds = array<i64: 1>, scalar_prefetch = 0 : i64, scratch_operands = 0 : i64, tpu.core_type = #tpu.core_type<tc>, window_params = [{transform_indices = @transform_0, window_bounds = array<i64: 4, 512>}, {pipeline_mode = #tpu.pipeline_mode<synchronous>, transform_indices = @transform_1, window_bounds = array<i64: 144, 128>}, {transform_indices = @transform_2, window_bounds = array<i64: 8, 512>}]} {
    %c0 = arith.constant 0 : index
    %c0_0 = arith.constant 0 : index
    %0 = vector.load %arg1[%c0, %c0_0] : memref<4x512xf32, #tpu.memory_space<vmem>>, vector<4x512xf32>
    %c0_1 = arith.constant 0 : index
    %c0_2 = arith.constant 0 : index
    %1 = vector.load %arg2[%c0_1, %c0_2] : memref<144x128xf32, #tpu.memory_space<vmem>>, vector<128x128xf32>
    %2 = vector.extract_strided_slice %1 {offsets = [0, 4], sizes = [128, 1], strides = [1, 1]} : vector<128x128xf32> to vector<128x1xf32>
    %3 = vector.extract_strided_slice %1 {offsets = [0, 0], sizes = [128, 1], strides = [1, 1]} : vector<128x128xf32> to vector<128x1xf32>
    %4 = vector.extract_strided_slice %0 {offsets = [0, 0], sizes = [1, 512], strides = [1, 1]} : vector<4x512xf32> to vector<1x512xf32>
    %5 = vector.broadcast %3 : vector<128x1xf32> to vector<128x512xf32>
    %6 = vector.broadcast %4 : vector<1x512xf32> to vector<128x512xf32>
    %7 = arith.mulf %5, %6 : vector<128x512xf32>
    %8 = vector.broadcast %2 : vector<128x1xf32> to vector<128x512xf32>
    %9 = arith.addf %8, %7 : vector<128x512xf32>
    %10 = vector.extract_strided_slice %1 {offsets = [0, 1], sizes = [128, 1], strides = [1, 1]} : vector<128x128xf32> to vector<128x1xf32>
    %11 = vector.extract_strided_slice %0 {offsets = [1, 0], sizes = [1, 512], strides = [1, 1]} : vector<4x512xf32> to vector<1x512xf32>
    %12 = vector.broadcast %10 : vector<128x1xf32> to vector<128x512xf32>
    %13 = vector.broadcast %11 : vector<1x512xf32> to vector<128x512xf32>
    %14 = arith.mulf %12, %13 : vector<128x512xf32>
    %15 = arith.addf %9, %14 : vector<128x512xf32>
    %16 = vector.extract_strided_slice %1 {offsets = [0, 2], sizes = [128, 1], strides = [1, 1]} : vector<128x128xf32> to vector<128x1xf32>
    %17 = vector.extract_strided_slice %0 {offsets = [2, 0], sizes = [1, 512], strides = [1, 1]} : vector<4x512xf32> to vector<1x512xf32>
    %18 = vector.broadcast %16 : vector<128x1xf32> to vector<128x512xf32>
    %19 = vector.broadcast %17 : vector<1x512xf32> to vector<128x512xf32>
    %20 = arith.mulf %18, %19 : vector<128x512xf32>
    %21 = arith.addf %15, %20 : vector<128x512xf32>
    %22 = vector.extract_strided_slice %1 {offsets = [0, 3], sizes = [128, 1], strides = [1, 1]} : vector<128x128xf32> to vector<128x1xf32>
    %23 = vector.extract_strided_slice %0 {offsets = [3, 0], sizes = [1, 512], strides = [1, 1]} : vector<4x512xf32> to vector<1x512xf32>
    %24 = vector.broadcast %22 : vector<128x1xf32> to vector<128x512xf32>
    %25 = vector.broadcast %23 : vector<1x512xf32> to vector<128x512xf32>
    %26 = arith.mulf %24, %25 : vector<128x512xf32>
    %27 = arith.addf %21, %26 : vector<128x512xf32>
    %cst = arith.constant 0.000000e+00 : f32
    %28 = vector.broadcast %cst : f32 to vector<128x512xf32>
    %29 = arith.maximumf %27, %28 : vector<128x512xf32>
    %c128 = arith.constant 128 : index
    %c0_3 = arith.constant 0 : index
    %30 = vector.load %arg2[%c128, %c0_3] : memref<144x128xf32, #tpu.memory_space<vmem>>, vector<8x128xf32>
    %31 = arith.truncf %30 : vector<8x128xf32> to vector<8x128xbf16>
    %32 = arith.truncf %29 : vector<128x512xf32> to vector<128x512xbf16>
    %cst_4 = arith.constant dense<0.000000e+00> : vector<8x512xf32>
    %33 = tpu.matmul %31, %32, %cst_4 {dimension_numbers = #tpu.dot_dimension_numbers<[1], [0], [0], [1], [0, 0, 1, 1], [], []>} : vector<8x128xbf16>, vector<128x512xbf16>, vector<8x512xf32> -> vector<8x512xf32>
    %c136 = arith.constant 136 : index
    %c0_5 = arith.constant 0 : index
    %34 = vector.load %arg2[%c136, %c0_5] : memref<144x128xf32, #tpu.memory_space<vmem>>, vector<8x1xf32>
    %35 = vector.broadcast %34 : vector<8x1xf32> to vector<8x512xf32>
    %36 = arith.addf %33, %35 : vector<8x512xf32>
    %c0_6 = arith.constant 0 : index
    %c0_7 = arith.constant 0 : index
    %37 = vector.load %arg3[%c0_6, %c0_7] : memref<8x512xf32, #tpu.memory_space<vmem>>, vector<8x512xf32>
    tpu.vector_store %arg3[%c0_6, %c0_7], %36 {strides = array<i32>} : memref<8x512xf32, #tpu.memory_space<vmem>>, vector<8x512xf32>,
    return
  }
  func.func @transform_0(%arg0: i32) -> (i32, i32) {
    %c0_i32 = arith.constant 0 : i32
    %c0_i32_0 = arith.constant 0 : i32
    return %c0_i32, %arg0 : i32, i32
  }
  func.func @transform_1(%arg0: i32) -> (i32, i32) {
    %c0_i32 = arith.constant 0 : i32
    %c0_i32_0 = arith.constant 0 : i32
    %c0_i32_1 = arith.constant 0 : i32
    return %c0_i32, %c0_i32_0 : i32, i32
  }
  func.func @transform_2(%arg0: i32) -> (i32, i32) {
    %c0_i32 = arith.constant 0 : i32
    %c0_i32_0 = arith.constant 0 : i32
    return %c0_i32, %arg0 : i32, i32
  }
}

</mosaic_0001>

<llo_original>
// kernel: net_forward.1
$region0: #{net_forward.1}
  #allocation0 [shape = 'u32[]', space=smem, size = 0x4, offset = 0x4, fixed_abs, tag = 'smem constant byte address 0x4 - core index']
  #allocation1 [shape = 'u32[144,128]{1,0:T(1,128)}', space=vmem, size = 0x12000, scoped, tag = 'internal scratch']
  %s0 = inlined_call_operand.hbm [shape: f32[4,512], index: 0, kind: input, shape index: {}]
  %s1 = inlined_call_operand.hbm [shape: f32[144,128], index: 1, kind: input, shape index: {}]
  %s2 = inlined_call_operand.vmem [shape: f32[8,512], index: 2, kind: output, shape index: {}]
  %s3 = sld [smem:[#allocation0]]
  $region26: #{net_forward.1} parent=0
    _
  %s5 = ssub.s32 1, %s3
  %s6 = scalar_select 0, %s5, %s3
  $region1: #{net_forward.1} parent=0
    #allocation2 [shape = 'u8[8192]{0}', space=vmem, size = 0x2000, scoped, tag = 'input window, operand 0, single buffered']
    #allocation3 [shape = 's32[1]{0}', space=sflag, size = 0x4, scoped, tag = 'scoped memory for net_forward.1']
    #allocation4 [shape = 'u8[73728]{0}', space=vmem, size = 0x12000, scoped, tag = 'input window, operand 1, single buffered']
    #allocation5 [shape = 's32[1]{0}', space=sflag, size = 0x4, scoped, tag = 'scoped memory for net_forward.1']
    %7 = vsyncpa [#allocation3], 0
    %8 = vsyncpa [#allocation5], 0
    // Predicated region
    $region2: #{net_forward.1} parent=1 // pred_check
      _
    $region3: #{net_forward.1} parent=1 // pred_check_branch
      %10 = sbr.rel (0) target = $region5
    $region4: #{net_forward.1} parent=1 // pred_region
      %s12 = ssub.s32 256, 256
      %13 = vsyncadd [#allocation3], %s12
      %s15 = sshll.u32 [#allocation2], 4
      %s16 = int_to_ptr.vmem [resolvable:$true] %s15
      %18 = dma.hbm_to_vmem [thread:$0]  %s0, 256, %s16, [#allocation3]
    $region5: #{net_forward.1} parent=1 // pred_fallthru
      _
    // Predicated region
    $region6: #{net_forward.1} parent=1 // pred_check
      _
    $region7: #{net_forward.1} parent=1 // pred_check_branch
      %20 = sbr.rel (0) target = $region9
    $region8: #{net_forward.1} parent=1 // pred_region
      %s22 = ssub.s32 2304, 2304
      %23 = vsyncadd [#allocation5], %s22
      %s24 = sshll.u32 [#allocation4], 4
      %s25 = int_to_ptr.vmem [resolvable:$true] %s24
      %30 = dma.hbm_to_vmem [thread:$0]  %s1, 2304, %s25, [#allocation5], 128, 128, 8
    $region9: #{net_forward.1} parent=1 // pred_fallthru
      _
    // Predicated region
    $region10: #{net_forward.1} parent=1 // pred_check
      _
    $region11: #{net_forward.1} parent=1 // pred_check_branch
      %32 = sbr.rel (0) target = $region13
    $region12: #{net_forward.1} parent=1 // pred_region
      %33 = dma.done [#allocation3], 256
    $region13: #{net_forward.1} parent=1 // pred_fallthru
      _
    // Predicated region
    $region14: #{net_forward.1} parent=1 // pred_check
      _
    $region15: #{net_forward.1} parent=1 // pred_check_branch
      %35 = sbr.rel (0) target = $region17
    $region16: #{net_forward.1} parent=1 // pred_region
      %36 = dma.done [#allocation5], 2304
    $region17: #{net_forward.1} parent=1 // pred_fallthru
      _
    %v38 = vld [vmem:[#allocation2] sm:$0xff]
    %v39 = vld [vmem:[#allocation2 + $0x8] sm:$0xff]
    %v40 = vld [vmem:[#allocation4] sm:$0xff]
    %v41 = vld [vmem:[#allocation4 + $0x8] sm:$0xff]
    %v42 = vld [vmem:[#allocation4 + $0x10] sm:$0xff]
    %v43 = vld [vmem:[#allocation4 + $0x18] sm:$0xff]
    %v44 = vld [vmem:[#allocation4 + $0x20] sm:$0xff]
    %v45 = vld [vmem:[#allocation4 + $0x28] sm:$0xff]
    %v46 = vld [vmem:[#allocation4 + $0x30] sm:$0xff]
    %v47 = vld [vmem:[#allocation4 + $0x38] sm:$0xff]
    %v48 = vld [vmem:[#allocation4 + $0x40] sm:$0xff]
    %v49 = vld [vmem:[#allocation4 + $0x48] sm:$0xff]
    %v50 = vld [vmem:[#allocation4 + $0x50] sm:$0xff]
    %v51 = vld [vmem:[#allocation4 + $0x58] sm:$0xff]
    %v52 = vld [vmem:[#allocation4 + $0x60] sm:$0xff]
    %v53 = vld [vmem:[#allocation4 + $0x68] sm:$0xff]
    %v54 = vld [vmem:[#allocation4 + $0x70] sm:$0xff]
    %v55 = vld [vmem:[#allocation4 + $0x78] sm:$0xff]
    %57 = vset.pattern.permute.xlu0 0
    %58 = vperm.xlu0 %57, %v40
    %v59 = vpop.permute.xlu0 %58
    %62 = vset.pattern.permute.xlu0 0
    %63 = vperm.xlu0 %62, %v41
    %v64 = vpop.permute.xlu0 %63
    %67 = vset.pattern.permute.xlu0 0
    %68 = vperm.xlu0 %67, %v42
    %v69 = vpop.permute.xlu0 %68
    %72 = vset.pattern.permute.xlu0 0
    %73 = vperm.xlu0 %72, %v43
    %v74 = vpop.permute.xlu0 %73
    %77 = vset.pattern.permute.xlu0 0
    %78 = vperm.xlu0 %77, %v44
    %v79 = vpop.permute.xlu0 %78
    %82 = vset.pattern.permute.xlu0 0
    %83 = vperm.xlu0 %82, %v45
    %v84 = vpop.permute.xlu0 %83
    %87 = vset.pattern.permute.xlu0 0
    %88 = vperm.xlu0 %87, %v46
    %v89 = vpop.permute.xlu0 %88
    %92 = vset.pattern.permute.xlu0 0
    %93 = vperm.xlu0 %92, %v47
    %v94 = vpop.permute.xlu0 %93
    %97 = vset.pattern.permute.xlu0 0
    %98 = vperm.xlu0 %97, %v48
    %v99 = vpop.permute.xlu0 %98
    %102 = vset.pattern.permute.xlu0 0
    %103 = vperm.xlu0 %102, %v49
    %v104 = vpop.permute.xlu0 %103
    %107 = vset.pattern.permute.xlu0 0
    %108 = vperm.xlu0 %107, %v50
    %v109 = vpop.permute.xlu0 %108
    %112 = vset.pattern.permute.xlu0 0
    %113 = vperm.xlu0 %112, %v51
    %v114 = vpop.permute.xlu0 %113
    %117 = vset.pattern.permute.xlu0 0
    %118 = vperm.xlu0 %117, %v52
    %v119 = vpop.permute.xlu0 %118
    %122 = vset.pattern.permute.xlu0 0
    %123 = vperm.xlu0 %122, %v53
    %v124 = vpop.permute.xlu0 %123
    %127 = vset.pattern.permute.xlu0 0
    %128 = vperm.xlu0 %127, %v54
    %v129 = vpop.permute.xlu0 %128
    %132 = vset.pattern.permute.xlu0 0
    %133 = vperm.xlu0 %132, %v55
    %v134 = vpop.permute.xlu0 %133
    %v138 = vlaneseq
    %v139 = vshrl.u32 %v138, 7
    %v140 = vsub.s32 0, %v139
    %v141 = vrot.slane %v38, %v140
    %v142 = vlaneseq
    %v143 = vshrl.u32 %v142, 7
    %v144 = vsub.s32 4, %v143
    %v145 = vrot.slane %v38, %v144
    %v146 = vlaneseq
    %v147 = vshrl.u32 %v146, 7
    %v148 = vsub.s32 0, %v147
    %v149 = vrot.slane %v39, %v148
    %v150 = vlaneseq
    %v151 = vshrl.u32 %v150, 7
    %v152 = vsub.s32 4, %v151
    %v153 = vrot.slane %v39, %v152
    %v158 = vlaneseq
    %v159 = vshrl.u32 %v158, 7
    %v160 = vsub.s32 0, %v159
    %v161 = vrot.slane %v141, %v160
    %v162 = vlaneseq
    %v163 = vshrl.u32 %v162, 7
    %v164 = vsub.s32 0, %v163
    %v165 = vrot.slane %v145, %v164
    %v166 = vlaneseq
    %v167 = vshrl.u32 %v166, 7
    %v168 = vsub.s32 0, %v167
    %v169 = vrot.slane %v149, %v168
    %v170 = vlaneseq
    %v171 = vshrl.u32 %v170, 7
    %v172 = vsub.s32 0, %v171
    %v173 = vrot.slane %v153, %v172
    %v174 = vmul.f32 %v59, %v161
    %v175 = vmul.f32 %v59, %v165
    %v176 = vmul.f32 %v59, %v169
    %v177 = vmul.f32 %v59, %v173
    %v178 = vmul.f32 %v64, %v161
    %v179 = vmul.f32 %v64, %v165
    %v180 = vmul.f32 %v64, %v169
    %v181 = vmul.f32 %v64, %v173
    %v182 = vmul.f32 %v69, %v161
    %v183 = vmul.f32 %v69, %v165
    %v184 = vmul.f32 %v69, %v169
    %v185 = vmul.f32 %v69, %v173
    %v186 = vmul.f32 %v74, %v161
    %v187 = vmul.f32 %v74, %v165
    %v188 = vmul.f32 %v74, %v169
    %v189 = vmul.f32 %v74, %v173
    %v190 = vmul.f32 %v79, %v161
    %v191 = vmul.f32 %v79, %v165
    %v192 = vmul.f32 %v79, %v169
    %v193 = vmul.f32 %v79, %v173
    %v194 = vmul.f32 %v84, %v161
    %v195 = vmul.f32 %v84, %v165
    %v196 = vmul.f32 %v84, %v169
    %v197 = vmul.f32 %v84, %v173
    %v198 = vmul.f32 %v89, %v161
    %v199 = vmul.f32 %v89, %v165
    %v200 = vmul.f32 %v89, %v169
    %v201 = vmul.f32 %v89, %v173
    %v202 = vmul.f32 %v94, %v161
    %v203 = vmul.f32 %v94, %v165
    %v204 = vmul.f32 %v94, %v169
    %v205 = vmul.f32 %v94, %v173
    %v206 = vmul.f32 %v99, %v161
    %v207 = vmul.f32 %v99, %v165
    %v208 = vmul.f32 %v99, %v169
    %v209 = vmul.f32 %v99, %v173
    %v210 = vmul.f32 %v104, %v161
    %v211 = vmul.f32 %v104, %v165
    %v212 = vmul.f32 %v104, %v169
    %v213 = vmul.f32 %v104, %v173
    %v214 = vmul.f32 %v109, %v161
    %v215 = vmul.f32 %v109, %v165
    %v216 = vmul.f32 %v109, %v169
    %v217 = vmul.f32 %v109, %v173
    %v218 = vmul.f32 %v114, %v161
    %v219 = vmul.f32 %v114, %v165
    %v220 = vmul.f32 %v114, %v169
    %v221 = vmul.f32 %v114, %v173
    %v222 = vmul.f32 %v119, %v161
    %v223 = vmul.f32 %v119, %v165
    %v224 = vmul.f32 %v119, %v169
    %v225 = vmul.f32 %v119, %v173
    %v226 = vmul.f32 %v124, %v161
    %v227 = vmul.f32 %v124, %v165
    %v228 = vmul.f32 %v124, %v169
    %v229 = vmul.f32 %v124, %v173
    %v230 = vmul.f32 %v129, %v161
    %v231 = vmul.f32 %v129, %v165
    %v232 = vmul.f32 %v129, %v169
    %v233 = vmul.f32 %v129, %v173
    %v234 = vmul.f32 %v134, %v161
    %v235 = vmul.f32 %v134, %v165
    %v236 = vmul.f32 %v134, %v169
    %v237 = vmul.f32 %v134, %v173
    %238 = vset.pattern.permute.xlu0 4
    %239 = vperm.xlu0 %238, %v40
    %v240 = vpop.permute.xlu0 %239
    %242 = vset.pattern.permute.xlu0 4
    %243 = vperm.xlu0 %242, %v41
    %v244 = vpop.permute.xlu0 %243
    %246 = vset.pattern.permute.xlu0 4
    %247 = vperm.xlu0 %246, %v42
    %v248 = vpop.permute.xlu0 %247
    %250 = vset.pattern.permute.xlu0 4
    %251 = vperm.xlu0 %250, %v43
    %v252 = vpop.permute.xlu0 %251
    %254 = vset.pattern.permute.xlu0 4
    %255 = vperm.xlu0 %254, %v44
    %v256 = vpop.permute.xlu0 %255
    %258 = vset.pattern.permute.xlu0 4
    %259 = vperm.xlu0 %258, %v45
    %v260 = vpop.permute.xlu0 %259
    %262 = vset.pattern.permute.xlu0 4
    %263 = vperm.xlu0 %262, %v46
    %v264 = vpop.permute.xlu0 %263
    %266 = vset.pattern.permute.xlu0 4
    %267 = vperm.xlu0 %266, %v47
    %v268 = vpop.permute.xlu0 %267
    %270 = vset.pattern.permute.xlu0 4
    %271 = vperm.xlu0 %270, %v48
    %v272 = vpop.permute.xlu0 %271
    %274 = vset.pattern.permute.xlu0 4
    %275 = vperm.xlu0 %274, %v49
    %v276 = vpop.permute.xlu0 %275
    %278 = vset.pattern.permute.xlu0 4
    %279 = vperm.xlu0 %278, %v50
    %v280 = vpop.permute.xlu0 %279
    %282 = vset.pattern.permute.xlu0 4
    %283 = vperm.xlu0 %282, %v51
    %v284 = vpop.permute.xlu0 %283
    %286 = vset.pattern.permute.xlu0 4
    %287 = vperm.xlu0 %286, %v52
    %v288 = vpop.permute.xlu0 %287
    %290 = vset.pattern.permute.xlu0 4
    %291 = vperm.xlu0 %290, %v53
    %v292 = vpop.permute.xlu0 %291
    %294 = vset.pattern.permute.xlu0 4
    %295 = vperm.xlu0 %294, %v54
    %v296 = vpop.permute.xlu0 %295
    %298 = vset.pattern.permute.xlu0 4
    %299 = vperm.xlu0 %298, %v55
    %v300 = vpop.permute.xlu0 %299
    %v302 = vadd.f32 %v240, %v174
    %v303 = vadd.f32 %v240, %v175
    %v304 = vadd.f32 %v240, %v176
    %v305 = vadd.f32 %v240, %v177
    %v306 = vadd.f32 %v244, %v178
    %v307 = vadd.f32 %v244, %v179
    %v308 = vadd.f32 %v244, %v180
    %v309 = vadd.f32 %v244, %v181
    %v310 = vadd.f32 %v248, %v182
    %v311 = vadd.f32 %v248, %v183
    %v312 = vadd.f32 %v248, %v184
    %v313 = vadd.f32 %v248, %v185
    %v314 = vadd.f32 %v252, %v186
    %v315 = vadd.f32 %v252, %v187
    %v316 = vadd.f32 %v252, %v188
    %v317 = vadd.f32 %v252, %v189
    %v318 = vadd.f32 %v256, %v190
    %v319 = vadd.f32 %v256, %v191
    %v320 = vadd.f32 %v256, %v192
    %v321 = vadd.f32 %v256, %v193
    %v322 = vadd.f32 %v260, %v194
    %v323 = vadd.f32 %v260, %v195
    %v324 = vadd.f32 %v260, %v196
    %v325 = vadd.f32 %v260, %v197
    %v326 = vadd.f32 %v264, %v198
    %v327 = vadd.f32 %v264, %v199
    %v328 = vadd.f32 %v264, %v200
    %v329 = vadd.f32 %v264, %v201
    %v330 = vadd.f32 %v268, %v202
    %v331 = vadd.f32 %v268, %v203
    %v332 = vadd.f32 %v268, %v204
    %v333 = vadd.f32 %v268, %v205
    %v334 = vadd.f32 %v272, %v206
    %v335 = vadd.f32 %v272, %v207
    %v336 = vadd.f32 %v272, %v208
    %v337 = vadd.f32 %v272, %v209
    %v338 = vadd.f32 %v276, %v210
    %v339 = vadd.f32 %v276, %v211
    %v340 = vadd.f32 %v276, %v212
    %v341 = vadd.f32 %v276, %v213
    %v342 = vadd.f32 %v280, %v214
    %v343 = vadd.f32 %v280, %v215
    %v344 = vadd.f32 %v280, %v216
    %v345 = vadd.f32 %v280, %v217
    %v346 = vadd.f32 %v284, %v218
    %v347 = vadd.f32 %v284, %v219
    %v348 = vadd.f32 %v284, %v220
    %v349 = vadd.f32 %v284, %v221
    %v350 = vadd.f32 %v288, %v222
    %v351 = vadd.f32 %v288, %v223
    %v352 = vadd.f32 %v288, %v224
    %v353 = vadd.f32 %v288, %v225
    %v354 = vadd.f32 %v292, %v226
    %v355 = vadd.f32 %v292, %v227
    %v356 = vadd.f32 %v292, %v228
    %v357 = vadd.f32 %v292, %v229
    %v358 = vadd.f32 %v296, %v230
    %v359 = vadd.f32 %v296, %v231
    %v360 = vadd.f32 %v296, %v232
    %v361 = vadd.f32 %v296, %v233
    %v362 = vadd.f32 %v300, %v234
    %v363 = vadd.f32 %v300, %v235
    %v364 = vadd.f32 %v300, %v236
    %v365 = vadd.f32 %v300, %v237
    %366 = vset.pattern.permute.xlu0 1
    %367 = vperm.xlu0 %366, %v40
    %v368 = vpop.permute.xlu0 %367
    %370 = vset.pattern.permute.xlu0 1
    %371 = vperm.xlu0 %370, %v41
    %v372 = vpop.permute.xlu0 %371
    %374 = vset.pattern.permute.xlu0 1
    %375 = vperm.xlu0 %374, %v42
    %v376 = vpop.permute.xlu0 %375
    %378 = vset.pattern.permute.xlu0 1
    %379 = vperm.xlu0 %378, %v43
    %v380 = vpop.permute.xlu0 %379
    %382 = vset.pattern.permute.xlu0 1
    %383 = vperm.xlu0 %382, %v44
    %v384 = vpop.permute.xlu0 %383
    %386 = vset.pattern.permute.xlu0 1
    %387 = vperm.xlu0 %386, %v45
    %v388 = vpop.permute.xlu0 %387
    %390 = vset.pattern.permute.xlu0 1
    %391 = vperm.xlu0 %390, %v46
    %v392 = vpop.permute.xlu0 %391
    %394 = vset.pattern.permute.xlu0 1
    %395 = vperm.xlu0 %394, %v47
    %v396 = vpop.permute.xlu0 %395
    %398 = vset.pattern.permute.xlu0 1
    %399 = vperm.xlu0 %398, %v48
    %v400 = vpop.permute.xlu0 %399
    %402 = vset.pattern.permute.xlu0 1
    %403 = vperm.xlu0 %402, %v49
    %v404 = vpop.permute.xlu0 %403
    %406 = vset.pattern.permute.xlu0 1
    %407 = vperm.xlu0 %406, %v50
    %v408 = vpop.permute.xlu0 %407
    %410 = vset.pattern.permute.xlu0 1
    %411 = vperm.xlu0 %410, %v51
    %v412 = vpop.permute.xlu0 %411
    %414 = vset.pattern.permute.xlu0 1
    %415 = vperm.xlu0 %414, %v52
    %v416 = vpop.permute.xlu0 %415
    %418 = vset.pattern.permute.xlu0 1
    %419 = vperm.xlu0 %418, %v53
    %v420 = vpop.permute.xlu0 %419
    %422 = vset.pattern.permute.xlu0 1
    %423 = vperm.xlu0 %422, %v54
    %v424 = vpop.permute.xlu0 %423
    %426 = vset.pattern.permute.xlu0 1
    %427 = vperm.xlu0 %426, %v55
    %v428 = vpop.permute.xlu0 %427
    %v430 = vlaneseq
    %v431 = vshrl.u32 %v430, 7
    %v432 = vsub.s32 1, %v431
    %v433 = vrot.slane %v38, %v432
    %v434 = vlaneseq
    %v435 = vshrl.u32 %v434, 7
    %v436 = vsub.s32 5, %v435
    %v437 = vrot.slane %v38, %v436
    %v438 = vlaneseq
    %v439 = vshrl.u32 %v438, 7
    %v440 = vsub.s32 1, %v439
    %v441 = vrot.slane %v39, %v440
    %v442 = vlaneseq
    %v443 = vshrl.u32 %v442, 7
    %v444 = vsub.s32 5, %v443
    %v445 = vrot.slane %v39, %v444
    %v450 = vlaneseq
    %v451 = vshrl.u32 %v450, 7
    %v452 = vsub.s32 1, %v451
    %v453 = vrot.slane %v433, %v452
    %v454 = vlaneseq
    %v455 = vshrl.u32 %v454, 7
    %v456 = vsub.s32 1, %v455
    %v457 = vrot.slane %v437, %v456
    %v458 = vlaneseq
    %v459 = vshrl.u32 %v458, 7
    %v460 = vsub.s32 1, %v459
    %v461 = vrot.slane %v441, %v460
    %v462 = vlaneseq
    %v463 = vshrl.u32 %v462, 7
    %v464 = vsub.s32 1, %v463
    %v465 = vrot.slane %v445, %v464
    %v466 = vmul.f32 %v368, %v453
    %v467 = vmul.f32 %v368, %v457
    %v468 = vmul.f32 %v368, %v461
    %v469 = vmul.f32 %v368, %v465
    %v470 = vmul.f32 %v372, %v453
    %v471 = vmul.f32 %v372, %v457
    %v472 = vmul.f32 %v372, %v461
    %v473 = vmul.f32 %v372, %v465
    %v474 = vmul.f32 %v376, %v453
    %v475 = vmul.f32 %v376, %v457
    %v476 = vmul.f32 %v376, %v461
    %v477 = vmul.f32 %v376, %v465
    %v478 = vmul.f32 %v380, %v453
    %v479 = vmul.f32 %v380, %v457
    %v480 = vmul.f32 %v380, %v461
    %v481 = vmul.f32 %v380, %v465
    %v482 = vmul.f32 %v384, %v453
    %v483 = vmul.f32 %v384, %v457
    %v484 = vmul.f32 %v384, %v461
    %v485 = vmul.f32 %v384, %v465
    %v486 = vmul.f32 %v388, %v453
    %v487 = vmul.f32 %v388, %v457
    %v488 = vmul.f32 %v388, %v461
    %v489 = vmul.f32 %v388, %v465
    %v490 = vmul.f32 %v392, %v453
    %v491 = vmul.f32 %v392, %v457
    %v492 = vmul.f32 %v392, %v461
    %v493 = vmul.f32 %v392, %v465
    %v494 = vmul.f32 %v396, %v453
    %v495 = vmul.f32 %v396, %v457
    %v496 = vmul.f32 %v396, %v461
    %v497 = vmul.f32 %v396, %v465
    %v498 = vmul.f32 %v400, %v453
    %v499 = vmul.f32 %v400, %v457
    %v500 = vmul.f32 %v400, %v461
    %v501 = vmul.f32 %v400, %v465
    %v502 = vmul.f32 %v404, %v453
    %v503 = vmul.f32 %v404, %v457
    %v504 = vmul.f32 %v404, %v461
    %v505 = vmul.f32 %v404, %v465
    %v506 = vmul.f32 %v408, %v453
    %v507 = vmul.f32 %v408, %v457
    %v508 = vmul.f32 %v408, %v461
    %v509 = vmul.f32 %v408, %v465
    %v510 = vmul.f32 %v412, %v453
    %v511 = vmul.f32 %v412, %v457
    %v512 = vmul.f32 %v412, %v461
    %v513 = vmul.f32 %v412, %v465
    %v514 = vmul.f32 %v416, %v453
    %v515 = vmul.f32 %v416, %v457
    %v516 = vmul.f32 %v416, %v461
    %v517 = vmul.f32 %v416, %v465
    %v518 = vmul.f32 %v420, %v453
    %v519 = vmul.f32 %v420, %v457
    %v520 = vmul.f32 %v420, %v461
    %v521 = vmul.f32 %v420, %v465
    %v522 = vmul.f32 %v424, %v453
    %v523 = vmul.f32 %v424, %v457
    %v524 = vmul.f32 %v424, %v461
    %v525 = vmul.f32 %v424, %v465
    %v526 = vmul.f32 %v428, %v453
    %v527 = vmul.f32 %v428, %v457
    %v528 = vmul.f32 %v428, %v461
    %v529 = vmul.f32 %v428, %v465
    %v530 = vadd.f32 %v302, %v466
    %v531 = vadd.f32 %v303, %v467
    %v532 = vadd.f32 %v304, %v468
    %v533 = vadd.f32 %v305, %v469
    %v534 = vadd.f32 %v306, %v470
    %v535 = vadd.f32 %v307, %v471
    %v536 = vadd.f32 %v308, %v472
    %v537 = vadd.f32 %v309, %v473
    %v538 = vadd.f32 %v310, %v474
    %v539 = vadd.f32 %v311, %v475
    %v540 = vadd.f32 %v312, %v476
    %v541 = vadd.f32 %v313, %v477
    %v542 = vadd.f32 %v314, %v478
    %v543 = vadd.f32 %v315, %v479
    %v544 = vadd.f32 %v316, %v480
    %v545 = vadd.f32 %v317, %v481
    %v546 = vadd.f32 %v318, %v482
    %v547 = vadd.f32 %v319, %v483
    %v548 = vadd.f32 %v320, %v484
    %v549 = vadd.f32 %v321, %v485
    %v550 = vadd.f32 %v322, %v486
    %v551 = vadd.f32 %v323, %v487
    %v552 = vadd.f32 %v324, %v488
    %v553 = vadd.f32 %v325, %v489
    %v554 = vadd.f32 %v326, %v490
    %v555 = vadd.f32 %v327, %v491
    %v556 = vadd.f32 %v328, %v492
    %v557 = vadd.f32 %v329, %v493
    %v558 = vadd.f32 %v330, %v494
    %v559 = vadd.f32 %v331, %v495
    %v560 = vadd.f32 %v332, %v496
    %v561 = vadd.f32 %v333, %v497
    %v562 = vadd.f32 %v334, %v498
    %v563 = vadd.f32 %v335, %v499
    %v564 = vadd.f32 %v336, %v500
    %v565 = vadd.f32 %v337, %v501
    %v566 = vadd.f32 %v338, %v502
    %v567 = vadd.f32 %v339, %v503
    %v568 = vadd.f32 %v340, %v504
    %v569 = vadd.f32 %v341, %v505
    %v570 = vadd.f32 %v342, %v506
    %v571 = vadd.f32 %v343, %v507
    %v572 = vadd.f32 %v344, %v508
    %v573 = vadd.f32 %v345, %v509
    %v574 = vadd.f32 %v346, %v510
    %v575 = vadd.f32 %v347, %v511
    %v576 = vadd.f32 %v348, %v512
    %v577 = vadd.f32 %v349, %v513
    %v578 = vadd.f32 %v350, %v514
    %v579 = vadd.f32 %v351, %v515
    %v580 = vadd.f32 %v352, %v516
    %v581 = vadd.f32 %v353, %v517
    %v582 = vadd.f32 %v354, %v518
    %v583 = vadd.f32 %v355, %v519
    %v584 = vadd.f32 %v356, %v520
    %v585 = vadd.f32 %v357, %v521
    %v586 = vadd.f32 %v358, %v522
    %v587 = vadd.f32 %v359, %v523
    %v588 = vadd.f32 %v360, %v524
    %v589 = vadd.f32 %v361, %v525
    %v590 = vadd.f32 %v362, %v526
    %v591 = vadd.f32 %v363, %v527
    %v592 = vadd.f32 %v364, %v528
    %v593 = vadd.f32 %v365, %v529
    %594 = vset.pattern.permute.xlu0 2
    %595 = vperm.xlu0 %594, %v40
    %v596 = vpop.permute.xlu0 %595
    %598 = vset.pattern.permute.xlu0 2
    %599 = vperm.xlu0 %598, %v41
    %v600 = vpop.permute.xlu0 %599
    %602 = vset.pattern.permute.xlu0 2
    %603 = vperm.xlu0 %602, %v42
    %v604 = vpop.permute.xlu0 %603
    %606 = vset.pattern.permute.xlu0 2
    %607 = vperm.xlu0 %606, %v43
    %v608 = vpop.permute.xlu0 %607
    %610 = vset.pattern.permute.xlu0 2
    %611 = vperm.xlu0 %610, %v44
    %v612 = vpop.permute.xlu0 %611
    %614 = vset.pattern.permute.xlu0 2
    %615 = vperm.xlu0 %614, %v45
    %v616 = vpop.permute.xlu0 %615
    %618 = vset.pattern.permute.xlu0 2
    %619 = vperm.xlu0 %618, %v46
    %v620 = vpop.permute.xlu0 %619
    %622 = vset.pattern.permute.xlu0 2
    %623 = vperm.xlu0 %622, %v47
    %v624 = vpop.permute.xlu0 %623
    %626 = vset.pattern.permute.xlu0 2
    %627 = vperm.xlu0 %626, %v48
    %v628 = vpop.permute.xlu0 %627
    %630 = vset.pattern.permute.xlu0 2
    %631 = vperm.xlu0 %630, %v49
    %v632 = vpop.permute.xlu0 %631
    %634 = vset.pattern.permute.xlu0 2
    %635 = vperm.xlu0 %634, %v50
    %v636 = vpop.permute.xlu0 %635
    %638 = vset.pattern.permute.xlu0 2
    %639 = vperm.xlu0 %638, %v51
    %v640 = vpop.permute.xlu0 %639
    %642 = vset.pattern.permute.xlu0 2
    %643 = vperm.xlu0 %642, %v52
    %v644 = vpop.permute.xlu0 %643
    %646 = vset.pattern.permute.xlu0 2
    %647 = vperm.xlu0 %646, %v53
    %v648 = vpop.permute.xlu0 %647
    %650 = vset.pattern.permute.xlu0 2
    %651 = vperm.xlu0 %650, %v54
    %v652 = vpop.permute.xlu0 %651
    %654 = vset.pattern.permute.xlu0 2
    %655 = vperm.xlu0 %654, %v55
    %v656 = vpop.permute.xlu0 %655
    %v658 = vlaneseq
    %v659 = vshrl.u32 %v658, 7
    %v660 = vsub.s32 2, %v659
    %v661 = vrot.slane %v38, %v660
    %v662 = vlaneseq
    %v663 = vshrl.u32 %v662, 7
    %v664 = vsub.s32 6, %v663
    %v665 = vrot.slane %v38, %v664
    %v666 = vlaneseq
    %v667 = vshrl.u32 %v666, 7
    %v668 = vsub.s32 2, %v667
    %v669 = vrot.slane %v39, %v668
    %v670 = vlaneseq
    %v671 = vshrl.u32 %v670, 7
    %v672 = vsub.s32 6, %v671
    %v673 = vrot.slane %v39, %v672
    %v678 = vlaneseq
    %v679 = vshrl.u32 %v678, 7
    %v680 = vsub.s32 2, %v679
    %v681 = vrot.slane %v661, %v680
    %v682 = vlaneseq
    %v683 = vshrl.u32 %v682, 7
    %v684 = vsub.s32 2, %v683
    %v685 = vrot.slane %v665, %v684
    %v686 = vlaneseq
    %v687 = vshrl.u32 %v686, 7
    %v688 = vsub.s32 2, %v687
    %v689 = vrot.slane %v669, %v688
    %v690 = vlaneseq
    %v691 = vshrl.u32 %v690, 7
    %v692 = vsub.s32 2, %v691
    %v693 = vrot.slane %v673, %v692
    %v694 = vmul.f32 %v596, %v681
    %v695 = vmul.f32 %v596, %v685
    %v696 = vmul.f32 %v596, %v689
    %v697 = vmul.f32 %v596, %v693
    %v698 = vmul.f32 %v600, %v681
    %v699 = vmul.f32 %v600, %v685
    %v700 = vmul.f32 %v600, %v689
    %v701 = vmul.f32 %v600, %v693
    %v702 = vmul.f32 %v604, %v681
    %v703 = vmul.f32 %v604, %v685
    %v704 = vmul.f32 %v604, %v689
    %v705 = vmul.f32 %v604, %v693
    %v706 = vmul.f32 %v608, %v681
    %v707 = vmul.f32 %v608, %v685
    %v708 = vmul.f32 %v608, %v689
    %v709 = vmul.f32 %v608, %v693
    %v710 = vmul.f32 %v612, %v681
    %v711 = vmul.f32 %v612, %v685
    %v712 = vmul.f32 %v612, %v689
    %v713 = vmul.f32 %v612, %v693
    %v714 = vmul.f32 %v616, %v681
    %v715 = vmul.f32 %v616, %v685
    %v716 = vmul.f32 %v616, %v689
    %v717 = vmul.f32 %v616, %v693
    %v718 = vmul.f32 %v620, %v681
    %v719 = vmul.f32 %v620, %v685
    %v720 = vmul.f32 %v620, %v689
    %v721 = vmul.f32 %v620, %v693
    %v722 = vmul.f32 %v624, %v681
    %v723 = vmul.f32 %v624, %v685
    %v724 = vmul.f32 %v624, %v689
    %v725 = vmul.f32 %v624, %v693
    %v726 = vmul.f32 %v628, %v681
    %v727 = vmul.f32 %v628, %v685
    %v728 = vmul.f32 %v628, %v689
    %v729 = vmul.f32 %v628, %v693
    %v730 = vmul.f32 %v632, %v681
    %v731 = vmul.f32 %v632, %v685
    %v732 = vmul.f32 %v632, %v689
    %v733 = vmul.f32 %v632, %v693
    %v734 = vmul.f32 %v636, %v681
    %v735 = vmul.f32 %v636, %v685
    %v736 = vmul.f32 %v636, %v689
    %v737 = vmul.f32 %v636, %v693
    %v738 = vmul.f32 %v640, %v681
    %v739 = vmul.f32 %v640, %v685
    %v740 = vmul.f32 %v640, %v689
    %v741 = vmul.f32 %v640, %v693
    %v742 = vmul.f32 %v644, %v681
    %v743 = vmul.f32 %v644, %v685
    %v744 = vmul.f32 %v644, %v689
    %v745 = vmul.f32 %v644, %v693
    %v746 = vmul.f32 %v648, %v681
    %v747 = vmul.f32 %v648, %v685
    %v748 = vmul.f32 %v648, %v689
    %v749 = vmul.f32 %v648, %v693
    %v750 = vmul.f32 %v652, %v681
    %v751 = vmul.f32 %v652, %v685
    %v752 = vmul.f32 %v652, %v689
    %v753 = vmul.f32 %v652, %v693
    %v754 = vmul.f32 %v656, %v681
    %v755 = vmul.f32 %v656, %v685
    %v756 = vmul.f32 %v656, %v689
    %v757 = vmul.f32 %v656, %v693
    %v758 = vadd.f32 %v530, %v694
    %v759 = vadd.f32 %v531, %v695
    %v760 = vadd.f32 %v532, %v696
    %v761 = vadd.f32 %v533, %v697
    %v762 = vadd.f32 %v534, %v698
    %v763 = vadd.f32 %v535, %v699
    %v764 = vadd.f32 %v536, %v700
    %v765 = vadd.f32 %v537, %v701
    %v766 = vadd.f32 %v538, %v702
    %v767 = vadd.f32 %v539, %v703
    %v768 = vadd.f32 %v540, %v704
    %v769 = vadd.f32 %v541, %v705
    %v770 = vadd.f32 %v542, %v706
    %v771 = vadd.f32 %v543, %v707
    %v772 = vadd.f32 %v544, %v708
    %v773 = vadd.f32 %v545, %v709
    %v774 = vadd.f32 %v546, %v710
    %v775 = vadd.f32 %v547, %v711
    %v776 = vadd.f32 %v548, %v712
    %v777 = vadd.f32 %v549, %v713
    %v778 = vadd.f32 %v550, %v714
    %v779 = vadd.f32 %v551, %v715
    %v780 = vadd.f32 %v552, %v716
    %v781 = vadd.f32 %v553, %v717
    %v782 = vadd.f32 %v554, %v718
    %v783 = vadd.f32 %v555, %v719
    %v784 = vadd.f32 %v556, %v720
    %v785 = vadd.f32 %v557, %v721
    %v786 = vadd.f32 %v558, %v722
    %v787 = vadd.f32 %v559, %v723
    %v788 = vadd.f32 %v560, %v724
    %v789 = vadd.f32 %v561, %v725
    %v790 = vadd.f32 %v562, %v726
    %v791 = vadd.f32 %v563, %v727
    %v792 = vadd.f32 %v564, %v728
    %v793 = vadd.f32 %v565, %v729
    %v794 = vadd.f32 %v566, %v730
    %v795 = vadd.f32 %v567, %v731
    %v796 = vadd.f32 %v568, %v732
    %v797 = vadd.f32 %v569, %v733
    %v798 = vadd.f32 %v570, %v734
    %v799 = vadd.f32 %v571, %v735
    %v800 = vadd.f32 %v572, %v736
    %v801 = vadd.f32 %v573, %v737
    %v802 = vadd.f32 %v574, %v738
    %v803 = vadd.f32 %v575, %v739
    %v804 = vadd.f32 %v576, %v740
    %v805 = vadd.f32 %v577, %v741
    %v806 = vadd.f32 %v578, %v742
    %v807 = vadd.f32 %v579, %v743
    %v808 = vadd.f32 %v580, %v744
    %v809 = vadd.f32 %v581, %v745
    %v810 = vadd.f32 %v582, %v746
    %v811 = vadd.f32 %v583, %v747
    %v812 = vadd.f32 %v584, %v748
    %v813 = vadd.f32 %v585, %v749
    %v814 = vadd.f32 %v586, %v750
    %v815 = vadd.f32 %v587, %v751
    %v816 = vadd.f32 %v588, %v752
    %v817 = vadd.f32 %v589, %v753
    %v818 = vadd.f32 %v590, %v754
    %v819 = vadd.f32 %v591, %v755
    %v820 = vadd.f32 %v592, %v756
    %v821 = vadd.f32 %v593, %v757
    %822 = vset.pattern.permute.xlu0 3
    %823 = vperm.xlu0 %822, %v40
    %v824 = vpop.permute.xlu0 %823
    %826 = vset.pattern.permute.xlu0 3
    %827 = vperm.xlu0 %826, %v41
    %v828 = vpop.permute.xlu0 %827
    %830 = vset.pattern.permute.xlu0 3
    %831 = vperm.xlu0 %830, %v42
    %v832 = vpop.permute.xlu0 %831
    %834 = vset.pattern.permute.xlu0 3
    %835 = vperm.xlu0 %834, %v43
    %v836 = vpop.permute.xlu0 %835
    %838 = vset.pattern.permute.xlu0 3
    %839 = vperm.xlu0 %838, %v44
    %v840 = vpop.permute.xlu0 %839
    %842 = vset.pattern.permute.xlu0 3
    %843 = vperm.xlu0 %842, %v45
    %v844 = vpop.permute.xlu0 %843
    %846 = vset.pattern.permute.xlu0 3
    %847 = vperm.xlu0 %846, %v46
    %v848 = vpop.permute.xlu0 %847
    %850 = vset.pattern.permute.xlu0 3
    %851 = vperm.xlu0 %850, %v47
    %v852 = vpop.permute.xlu0 %851
    %854 = vset.pattern.permute.xlu0 3
    %855 = vperm.xlu0 %854, %v48
    %v856 = vpop.permute.xlu0 %855
    %858 = vset.pattern.permute.xlu0 3
    %859 = vperm.xlu0 %858, %v49
    %v860 = vpop.permute.xlu0 %859
    %862 = vset.pattern.permute.xlu0 3
    %863 = vperm.xlu0 %862, %v50
    %v864 = vpop.permute.xlu0 %863
    %866 = vset.pattern.permute.xlu0 3
    %867 = vperm.xlu0 %866, %v51
    %v868 = vpop.permute.xlu0 %867
    %870 = vset.pattern.permute.xlu0 3
    %871 = vperm.xlu0 %870, %v52
    %v872 = vpop.permute.xlu0 %871
    %874 = vset.pattern.permute.xlu0 3
    %875 = vperm.xlu0 %874, %v53
    %v876 = vpop.permute.xlu0 %875
    %878 = vset.pattern.permute.xlu0 3
    %879 = vperm.xlu0 %878, %v54
    %v880 = vpop.permute.xlu0 %879
    %882 = vset.pattern.permute.xlu0 3
    %883 = vperm.xlu0 %882, %v55
    %v884 = vpop.permute.xlu0 %883
    %v886 = vlaneseq
    %v887 = vshrl.u32 %v886, 7
    %v888 = vsub.s32 3, %v887
    %v889 = vrot.slane %v38, %v888
    %v890 = vlaneseq
    %v891 = vshrl.u32 %v890, 7
    %v892 = vsub.s32 7, %v891
    %v893 = vrot.slane %v38, %v892
    %v894 = vlaneseq
    %v895 = vshrl.u32 %v894, 7
    %v896 = vsub.s32 3, %v895
    %v897 = vrot.slane %v39, %v896
    %v898 = vlaneseq
    %v899 = vshrl.u32 %v898, 7
    %v900 = vsub.s32 7, %v899
    %v901 = vrot.slane %v39, %v900
    %v906 = vlaneseq
    %v907 = vshrl.u32 %v906, 7
    %v908 = vsub.s32 3, %v907
    %v909 = vrot.slane %v889, %v908
    %v910 = vlaneseq
    %v911 = vshrl.u32 %v910, 7
    %v912 = vsub.s32 3, %v911
    %v913 = vrot.slane %v893, %v912
    %v914 = vlaneseq
    %v915 = vshrl.u32 %v914, 7
    %v916 = vsub.s32 3, %v915
    %v917 = vrot.slane %v897, %v916
    %v918 = vlaneseq
    %v919 = vshrl.u32 %v918, 7
    %v920 = vsub.s32 3, %v919
    %v921 = vrot.slane %v901, %v920
    %v922 = vmul.f32 %v824, %v909
    %v923 = vmul.f32 %v824, %v913
    %v924 = vmul.f32 %v824, %v917
    %v925 = vmul.f32 %v824, %v921
    %v926 = vmul.f32 %v828, %v909
    %v927 = vmul.f32 %v828, %v913
    %v928 = vmul.f32 %v828, %v917
    %v929 = vmul.f32 %v828, %v921
    %v930 = vmul.f32 %v832, %v909
    %v931 = vmul.f32 %v832, %v913
    %v932 = vmul.f32 %v832, %v917
    %v933 = vmul.f32 %v832, %v921
    %v934 = vmul.f32 %v836, %v909
    %v935 = vmul.f32 %v836, %v913
    %v936 = vmul.f32 %v836, %v917
    %v937 = vmul.f32 %v836, %v921
    %v938 = vmul.f32 %v840, %v909
    %v939 = vmul.f32 %v840, %v913
    %v940 = vmul.f32 %v840, %v917
    %v941 = vmul.f32 %v840, %v921
    %v942 = vmul.f32 %v844, %v909
    %v943 = vmul.f32 %v844, %v913
    %v944 = vmul.f32 %v844, %v917
    %v945 = vmul.f32 %v844, %v921
    %v946 = vmul.f32 %v848, %v909
    %v947 = vmul.f32 %v848, %v913
    %v948 = vmul.f32 %v848, %v917
    %v949 = vmul.f32 %v848, %v921
    %v950 = vmul.f32 %v852, %v909
    %v951 = vmul.f32 %v852, %v913
    %v952 = vmul.f32 %v852, %v917
    %v953 = vmul.f32 %v852, %v921
    %v954 = vmul.f32 %v856, %v909
    %v955 = vmul.f32 %v856, %v913
    %v956 = vmul.f32 %v856, %v917
    %v957 = vmul.f32 %v856, %v921
    %v958 = vmul.f32 %v860, %v909
    %v959 = vmul.f32 %v860, %v913
    %v960 = vmul.f32 %v860, %v917
    %v961 = vmul.f32 %v860, %v921
    %v962 = vmul.f32 %v864, %v909
    %v963 = vmul.f32 %v864, %v913
    %v964 = vmul.f32 %v864, %v917
    %v965 = vmul.f32 %v864, %v921
    %v966 = vmul.f32 %v868, %v909
    %v967 = vmul.f32 %v868, %v913
    %v968 = vmul.f32 %v868, %v917
    %v969 = vmul.f32 %v868, %v921
    %v970 = vmul.f32 %v872, %v909
    %v971 = vmul.f32 %v872, %v913
    %v972 = vmul.f32 %v872, %v917
    %v973 = vmul.f32 %v872, %v921
    %v974 = vmul.f32 %v876, %v909
    %v975 = vmul.f32 %v876, %v913
    %v976 = vmul.f32 %v876, %v917
    %v977 = vmul.f32 %v876, %v921
    %v978 = vmul.f32 %v880, %v909
    %v979 = vmul.f32 %v880, %v913
    %v980 = vmul.f32 %v880, %v917
    %v981 = vmul.f32 %v880, %v921
    %v982 = vmul.f32 %v884, %v909
    %v983 = vmul.f32 %v884, %v913
    %v984 = vmul.f32 %v884, %v917
    %v985 = vmul.f32 %v884, %v921
    %v986 = vadd.f32 %v758, %v922
    %v987 = vadd.f32 %v759, %v923
    %v988 = vadd.f32 %v760, %v924
    %v989 = vadd.f32 %v761, %v925
    %v990 = vadd.f32 %v762, %v926
    %v991 = vadd.f32 %v763, %v927
    %v992 = vadd.f32 %v764, %v928
    %v993 = vadd.f32 %v765, %v929
    %v994 = vadd.f32 %v766, %v930
    %v995 = vadd.f32 %v767, %v931
    %v996 = vadd.f32 %v768, %v932
    %v997 = vadd.f32 %v769, %v933
    %v998 = vadd.f32 %v770, %v934
    %v999 = vadd.f32 %v771, %v935
    %v1000 = vadd.f32 %v772, %v936
    %v1001 = vadd.f32 %v773, %v937
    %v1002 = vadd.f32 %v774, %v938
    %v1003 = vadd.f32 %v775, %v939
    %v1004 = vadd.f32 %v776, %v940
    %v1005 = vadd.f32 %v777, %v941
    %v1006 = vadd.f32 %v778, %v942
    %v1007 = vadd.f32 %v779, %v943
    %v1008 = vadd.f32 %v780, %v944
    %v1009 = vadd.f32 %v781, %v945
    %v1010 = vadd.f32 %v782, %v946
    %v1011 = vadd.f32 %v783, %v947
    %v1012 = vadd.f32 %v784, %v948
    %v1013 = vadd.f32 %v785, %v949
    %v1014 = vadd.f32 %v786, %v950
    %v1015 = vadd.f32 %v787, %v951
    %v1016 = vadd.f32 %v788, %v952
    %v1017 = vadd.f32 %v789, %v953
    %v1018 = vadd.f32 %v790, %v954
    %v1019 = vadd.f32 %v791, %v955
    %v1020 = vadd.f32 %v792, %v956
    %v1021 = vadd.f32 %v793, %v957
    %v1022 = vadd.f32 %v794, %v958
    %v1023 = vadd.f32 %v795, %v959
    %v1024 = vadd.f32 %v796, %v960
    %v1025 = vadd.f32 %v797, %v961
    %v1026 = vadd.f32 %v798, %v962
    %v1027 = vadd.f32 %v799, %v963
    %v1028 = vadd.f32 %v800, %v964
    %v1029 = vadd.f32 %v801, %v965
    %v1030 = vadd.f32 %v802, %v966
    %v1031 = vadd.f32 %v803, %v967
    %v1032 = vadd.f32 %v804, %v968
    %v1033 = vadd.f32 %v805, %v969
    %v1034 = vadd.f32 %v806, %v970
    %v1035 = vadd.f32 %v807, %v971
    %v1036 = vadd.f32 %v808, %v972
    %v1037 = vadd.f32 %v809, %v973
    %v1038 = vadd.f32 %v810, %v974
    %v1039 = vadd.f32 %v811, %v975
    %v1040 = vadd.f32 %v812, %v976
    %v1041 = vadd.f32 %v813, %v977
    %v1042 = vadd.f32 %v814, %v978
    %v1043 = vadd.f32 %v815, %v979
    %v1044 = vadd.f32 %v816, %v980
    %v1045 = vadd.f32 %v817, %v981
    %v1046 = vadd.f32 %v818, %v982
    %v1047 = vadd.f32 %v819, %v983
    %v1048 = vadd.f32 %v820, %v984
    %v1049 = vadd.f32 %v821, %v985
    %v1050 = vmax.f32 %v986, 0.0
    %v1051 = vmax.f32 %v987, 0.0
    %v1052 = vmax.f32 %v988, 0.0
    %v1053 = vmax.f32 %v989, 0.0
    %v1054 = vmax.f32 %v990, 0.0
    %v1055 = vmax.f32 %v991, 0.0
    %v1056 = vmax.f32 %v992, 0.0
    %v1057 = vmax.f32 %v993, 0.0
    %v1058 = vmax.f32 %v994, 0.0
    %v1059 = vmax.f32 %v995, 0.0
    %v1060 = vmax.f32 %v996, 0.0
    %v1061 = vmax.f32 %v997, 0.0
    %v1062 = vmax.f32 %v998, 0.0
    %v1063 = vmax.f32 %v999, 0.0
    %v1064 = vmax.f32 %v1000, 0.0
    %v1065 = vmax.f32 %v1001, 0.0
    %v1066 = vmax.f32 %v1002, 0.0
    %v1067 = vmax.f32 %v1003, 0.0
    %v1068 = vmax.f32 %v1004, 0.0
    %v1069 = vmax.f32 %v1005, 0.0
    %v1070 = vmax.f32 %v1006, 0.0
    %v1071 = vmax.f32 %v1007, 0.0
    %v1072 = vmax.f32 %v1008, 0.0
    %v1073 = vmax.f32 %v1009, 0.0
    %v1074 = vmax.f32 %v1010, 0.0
    %v1075 = vmax.f32 %v1011, 0.0
    %v1076 = vmax.f32 %v1012, 0.0
    %v1077 = vmax.f32 %v1013, 0.0
    %v1078 = vmax.f32 %v1014, 0.0
    %v1079 = vmax.f32 %v1015, 0.0
    %v1080 = vmax.f32 %v1016, 0.0
    %v1081 = vmax.f32 %v1017, 0.0
    %v1082 = vmax.f32 %v1018, 0.0
    %v1083 = vmax.f32 %v1019, 0.0
    %v1084 = vmax.f32 %v1020, 0.0
    %v1085 = vmax.f32 %v1021, 0.0
    %v1086 = vmax.f32 %v1022, 0.0
    %v1087 = vmax.f32 %v1023, 0.0
    %v1088 = vmax.f32 %v1024, 0.0
    %v1089 = vmax.f32 %v1025, 0.0
    %v1090 = vmax.f32 %v1026, 0.0
    %v1091 = vmax.f32 %v1027, 0.0
    %v1092 = vmax.f32 %v1028, 0.0
    %v1093 = vmax.f32 %v1029, 0.0
    %v1094 = vmax.f32 %v1030, 0.0
    %v1095 = vmax.f32 %v1031, 0.0
    %v1096 = vmax.f32 %v1032, 0.0
    %v1097 = vmax.f32 %v1033, 0.0
    %v1098 = vmax.f32 %v1034, 0.0
    %v1099 = vmax.f32 %v1035, 0.0
    %v1100 = vmax.f32 %v1036, 0.0
    %v1101 = vmax.f32 %v1037, 0.0
    %v1102 = vmax.f32 %v1038, 0.0
    %v1103 = vmax.f32 %v1039, 0.0
    %v1104 = vmax.f32 %v1040, 0.0
    %v1105 = vmax.f32 %v1041, 0.0
    %v1106 = vmax.f32 %v1042, 0.0
    %v1107 = vmax.f32 %v1043, 0.0
    %v1108 = vmax.f32 %v1044, 0.0
    %v1109 = vmax.f32 %v1045, 0.0
    %v1110 = vmax.f32 %v1046, 0.0
    %v1111 = vmax.f32 %v1047, 0.0
    %v1112 = vmax.f32 %v1048, 0.0
    %v1113 = vmax.f32 %v1049, 0.0
    %v1114 = vld [vmem:[#allocation4 + $0x80] sm:$0xff]
    %v1115 = vpack.c.bf16 %v1114, %v1114
    %v1116 = vpack.c.bf16 %v1054, %v1050
    %v1117 = vpack.c.bf16 %v1055, %v1051
    %v1118 = vpack.c.bf16 %v1056, %v1052
    %v1119 = vpack.c.bf16 %v1057, %v1053
    %v1120 = vpack.c.bf16 %v1062, %v1058
    %v1121 = vpack.c.bf16 %v1063, %v1059
    %v1122 = vpack.c.bf16 %v1064, %v1060
    %v1123 = vpack.c.bf16 %v1065, %v1061
    %v1124 = vpack.c.bf16 %v1070, %v1066
    %v1125 = vpack.c.bf16 %v1071, %v1067
    %v1126 = vpack.c.bf16 %v1072, %v1068
    %v1127 = vpack.c.bf16 %v1073, %v1069
    %v1128 = vpack.c.bf16 %v1078, %v1074
    %v1129 = vpack.c.bf16 %v1079, %v1075
    %v1130 = vpack.c.bf16 %v1080, %v1076
    %v1131 = vpack.c.bf16 %v1081, %v1077
    %v1132 = vpack.c.bf16 %v1086, %v1082
    %v1133 = vpack.c.bf16 %v1087, %v1083
    %v1134 = vpack.c.bf16 %v1088, %v1084
    %v1135 = vpack.c.bf16 %v1089, %v1085
    %v1136 = vpack.c.bf16 %v1094, %v1090
    %v1137 = vpack.c.bf16 %v1095, %v1091
    %v1138 = vpack.c.bf16 %v1096, %v1092
    %v1139 = vpack.c.bf16 %v1097, %v1093
    %v1140 = vpack.c.bf16 %v1102, %v1098
    %v1141 = vpack.c.bf16 %v1103, %v1099
    %v1142 = vpack.c.bf16 %v1104, %v1100
    %v1143 = vpack.c.bf16 %v1105, %v1101
    %v1144 = vpack.c.bf16 %v1110, %v1106
    %v1145 = vpack.c.bf16 %v1111, %v1107
    %v1146 = vpack.c.bf16 %v1112, %v1108
    %v1147 = vpack.c.bf16 %v1113, %v1109
    %v1148 = vld [vmem:[#allocation4 + $0x88] sm:$0xff]
    %1150 = vset.pattern.permute.xlu0 0
    %1151 = vperm.xlu0 %1150, %v1148
    %v1152 = vpop.permute.xlu0 %1151
    %1154 = vmatprep.subr.bf16.mxu0 %v1145
    %1155 = vmatpush1.bf16.msra.mxu0 %v1144
    %1156 = vmatprep.subr.bf16.mxu0 %v1141
    %1157 = vmatpush1.bf16.msra.mxu0 %v1140
    %1158 = vmatprep.subr.bf16.mxu0 %v1137
    %1159 = vmatpush1.bf16.msra.mxu0 %v1136
    %1160 = vmatprep.subr.bf16.mxu0 %v1133
    %1161 = vmatpush1.bf16.msra.mxu0 %v1132
    %1162 = vmatprep.subr.bf16.mxu0 %v1129
    %1163 = vmatpush1.bf16.msra.mxu0 %v1128
    %1164 = vmatprep.subr.bf16.mxu0 %v1125
    %1165 = vmatpush1.bf16.msra.mxu0 %v1124
    %1166 = vmatprep.subr.bf16.mxu0 %v1121
    %1167 = vmatpush1.bf16.msra.mxu0 %v1120
    %1168 = vmatprep.subr.bf16.mxu0 %v1117
    %1169 = vmatpush1.bf16.msra.mxu0 %v1116
    %1170 = vmatprep.subr.bf16.mxu0 0
    %1171 = vmatpush2.bf16.msra.mxu0 0
    %1172 = vmatprep.subr.bf16.mxu0 0
    %1173 = vmatpush2.bf16.msra.mxu0 0
    %1174 = vmatprep.subr.bf16.mxu0 0
    %1175 = vmatpush2.bf16.msra.mxu0 0
    %1176 = vmatprep.subr.bf16.mxu0 0
    %1177 = vmatpush2.bf16.msra.mxu0 0
    %1178 = vmatprep.subr.bf16.mxu0 0
    %1179 = vmatpush2.bf16.msra.mxu0 0
    %1180 = vmatprep.subr.bf16.mxu0 0
    %1181 = vmatpush2.bf16.msra.mxu0 0
    %1182 = vmatprep.subr.bf16.mxu0 0
    %1183 = vmatpush2.bf16.msra.mxu0 0
    %1184 = vmatprep.subr.bf16.mxu0 0
    %1185 = vmatpush2.bf16.msra.mxu0 0
    %1186 = vmatprep.mubr.bf16.mxu0 0
    %1187 = vmatmul.mubr.bf16.gmra.mxu0 %v1115
    %v1188 = vpop.f32.mrf.mxu0
    %v1189 = vadd.f32 %v1152, %v1188
    %v1190 = vpop.f32.mrf.mxu0
    %v1191 = vadd.f32 %v1152, %v1190
    %v1192 = vpop.f32.mrf.mxu0
    %v1193 = vpop.f32.mrf.mxu0
    %1194 = vdwg.mxu0
    %1195 = vmatprep.subr.bf16.mxu0 %v1147
    %1196 = vmatpush1.bf16.msra.mxu0 %v1146
    %1197 = vmatprep.subr.bf16.mxu0 %v1143
    %1198 = vmatpush1.bf16.msra.mxu0 %v1142
    %1199 = vmatprep.subr.bf16.mxu0 %v1139
    %1200 = vmatpush1.bf16.msra.mxu0 %v1138
    %1201 = vmatprep.subr.bf16.mxu0 %v1135
    %1202 = vmatpush1.bf16.msra.mxu0 %v1134
    %1203 = vmatprep.subr.bf16.mxu0 %v1131
    %1204 = vmatpush1.bf16.msra.mxu0 %v1130
    %1205 = vmatprep.subr.bf16.mxu0 %v1127
    %1206 = vmatpush1.bf16.msra.mxu0 %v1126
    %1207 = vmatprep.subr.bf16.mxu0 %v1123
    %1208 = vmatpush1.bf16.msra.mxu0 %v1122
    %1209 = vmatprep.subr.bf16.mxu0 %v1119
    %1210 = vmatpush1.bf16.msra.mxu0 %v1118
    %1211 = vmatprep.subr.bf16.mxu0 0
    %1212 = vmatpush2.bf16.msra.mxu0 0
    %1213 = vmatprep.subr.bf16.mxu0 0
    %1214 = vmatpush2.bf16.msra.mxu0 0
    %1215 = vmatprep.subr.bf16.mxu0 0
    %1216 = vmatpush2.bf16.msra.mxu0 0
    %1217 = vmatprep.subr.bf16.mxu0 0
    %1218 = vmatpush2.bf16.msra.mxu0 0
    %1219 = vmatprep.subr.bf16.mxu0 0
    %1220 = vmatpush2.bf16.msra.mxu0 0
    %1221 = vmatprep.subr.bf16.mxu0 0
    %1222 = vmatpush2.bf16.msra.mxu0 0
    %1223 = vmatprep.subr.bf16.mxu0 0
    %1224 = vmatpush2.bf16.msra.mxu0 0
    %1225 = vmatprep.subr.bf16.mxu0 0
    %1226 = vmatpush2.bf16.msra.mxu0 0
    %1227 = vmatprep.mubr.bf16.mxu0 0
    %1228 = vmatmul.mubr.bf16.gmra.mxu0 %v1115
    %v1229 = vpop.f32.mrf.mxu0
    %v1230 = vadd.f32 %v1152, %v1229
    %v1231 = vpop.f32.mrf.mxu0
    %v1232 = vadd.f32 %v1152, %v1231
    %v1233 = vpop.f32.mrf.mxu0
    %v1234 = vpop.f32.mrf.mxu0
    %1235 = vdwg.mxu0
    %1236 = vst [vmem:[%s2] sm:$0xff] %v1189
    %1237 = vst [vmem:[%s2 + $0x8] sm:$0xff] %v1191
    %1238 = vst [vmem:[%s2 + $0x10] sm:$0xff] %v1230
    %1239 = vst [vmem:[%s2 + $0x18] sm:$0xff] %v1232
    // Predicated region
    $region18: #{net_forward.1} parent=1 // pred_check
      _
    $region19: #{net_forward.1} parent=1 // pred_check_branch
      %1241 = sbr.rel (0) target = $region21
    $region20: #{net_forward.1} parent=1 // pred_region
      _
    $region21: #{net_forward.1} parent=1 // pred_fallthru
      _
    // Predicated region
    $region22: #{net_forward.1} parent=1 // pred_check
      _
    $region23: #{net_forward.1} parent=1 // pred_check_branch
      %1243 = sbr.rel (0) target = $region25
    $region24: #{net_forward.1} parent=1 // pred_region
      _
    $region25: #{net_forward.1} parent=1 // pred_fallthru
      _
    %1244 = vsyncpa [#allocation3], 1
    %1245 = vsyncpa [#allocation5], 1

</llo_original>
